<compile_context>
chip_gen: v5e
topology: v5e:2x2
jax: 0.10.0
libtpu: 0.0.40
codegen_flags: <defaults>
</compile_context>

<pallas_src>
import jax
import jax.numpy as jnp
from jax.experimental import pallas as pl
from jax.experimental.pallas import tpu as pltpu

LOSS_WEIGHT = 1.0
EPS = 1e-9
MAX_TILE = 16384  # lanes per grid step (multiple of 128); ~1.3 MB double-buffered


def _iou_aware_kernel(ioup_ref, boxes_ref, out_ref):
    # boxes_ref: (8, T)  rows = [px1, py1, px2, py2, gx1, gy1, gx2, gy2]
    # ioup_ref / out_ref: (1, T)
    b = boxes_ref[...]
    px1, py1, px2, py2 = b[0:1, :], b[1:2, :], b[2:3, :], b[3:4, :]
    gx1, gy1, gx2, gy2 = b[4:5, :], b[5:6, :], b[6:7, :], b[7:8, :]

    x1 = jnp.maximum(px1, gx1)
    y1 = jnp.maximum(py1, gy1)
    x2 = jnp.minimum(px2, gx2)
    y2 = jnp.minimum(py2, gy2)

    zero = jnp.float32(0.0)
    overlap = jnp.maximum(x2 - x1, zero) * jnp.maximum(y2 - y1, zero)
    area_p = jnp.maximum(px2 - px1, zero) * jnp.maximum(py2 - py1, zero)
    area_g = jnp.maximum(gx2 - gx1, zero) * jnp.maximum(gy2 - gy1, zero)
    union = area_p + area_g - overlap + jnp.float32(EPS)
    iou = overlap / union  # detached target -> forward value identical

    # binary_cross_entropy_with_logits(x, iou), reduction='none':
    #   max(x, 0) - x * iou + log(1 + exp(-|x|))
    x = ioup_ref[...]
    loss = jnp.maximum(x, zero) - x * iou + jnp.log1p(jnp.exp(-jnp.abs(x)))
    if LOSS_WEIGHT != 1.0:  # trace-time constant; skip the multiply when weight==1
        loss = loss * jnp.float32(LOSS_WEIGHT)
    out_ref[...] = loss


def _round_up(x, m):
    return ((x + m - 1) // m) * m


def _choose_tile(n):
    """Largest lane-tile (multiple of 128, capped at MAX_TILE) for n elements."""
    return min(MAX_TILE, _round_up(n, 128))


def iou_aware_loss_planar(ioup, boxes8, *, tile=None):
    """ioup: (N,), boxes8: (8, N) planar rows [px1,py1,px2,py2,gx1,gy1,gx2,gy2].

    Returns the (N,) element-wise IoU-aware loss.
    """
    N = ioup.shape[0]
    assert boxes8.shape == (8, N)

    if tile is None:
        tile = _choose_tile(N)
    grid = pl.cdiv(N, tile)
    n_pad = grid * tile

    ioup2d = ioup.astype(jnp.float32).reshape(1, N)
    boxes8 = boxes8.astype(jnp.float32)
    if n_pad != N:
        # Zero padding is safe: zero boxes -> iou=0, ioup=0 -> finite BCE;
        # padded lanes are sliced off below.
        ioup2d = jnp.pad(ioup2d, ((0, 0), (0, n_pad - N)))
        boxes8 = jnp.pad(boxes8, ((0, 0), (0, n_pad - N)))

    out = pl.pallas_call(
        _iou_aware_kernel,
        out_shape=jax.ShapeDtypeStruct((1, n_pad), jnp.float32),
        grid_spec=pltpu.PrefetchScalarGridSpec(
            num_scalar_prefetch=0,
            grid=(grid,),
            in_specs=[
                pl.BlockSpec((1, tile), lambda i: (0, i)),
                pl.BlockSpec((8, tile), lambda i: (0, i)),
            ],
            out_specs=pl.BlockSpec((1, tile), lambda i: (0, i)),
        ),
        compiler_params=pltpu.CompilerParams(
            dimension_semantics=("parallel",)),
        cost_estimate=pl.CostEstimate(
            flops=25 * n_pad,
            transcendentals=3 * n_pad,
            bytes_accessed=40 * n_pad),
    )(ioup2d, boxes8)
    return out[0, :N]


def iou_aware_loss(ioup, pbox, gbox, *, tile=None):
    """Convenience entry: ioup (N,), pbox/gbox (N, 4) xyxy. Returns (N,) loss."""
    N = ioup.shape[0]
    assert pbox.shape == (N, 4) and gbox.shape == (N, 4)
    # TODO(synk): emit boxes planar (8, N) upstream; this transpose+concat moves
    # more HBM bytes than the kernel itself for large N.
    boxes8 = jnp.concatenate(
        [pbox.astype(jnp.float32).T, gbox.astype(jnp.float32).T], axis=0)
    return iou_aware_loss_planar(ioup, boxes8, tile=tile)


def _reference(ioup, pbox, gbox):
    """Pure-JAX reference (mirrors the PyTorch module's forward)."""
    px1, py1, px2, py2 = [pbox[:, i] for i in range(4)]
    gx1, gy1, gx2, gy2 = [gbox[:, i] for i in range(4)]
    x1 = jnp.maximum(px1, gx1)
    y1 = jnp.maximum(py1, gy1)
    x2 = jnp.minimum(px2, gx2)
    y2 = jnp.minimum(py2, gy2)
    overlap = jnp.clip(x2 - x1, 0) * jnp.clip(y2 - y1, 0)
    area1 = jnp.clip(px2 - px1, 0) * jnp.clip(py2 - py1, 0)
    area2 = jnp.clip(gx2 - gx1, 0) * jnp.clip(gy2 - gy1, 0)
    iou = overlap / (area1 + area2 - overlap + EPS)
    iou = jax.lax.stop_gradient(iou)
    x = ioup
    bce = jnp.maximum(x, 0) - x * iou + jnp.log1p(jnp.exp(-jnp.abs(x)))
    return bce * LOSS_WEIGHT


if __name__ == "__main__":
    key = jax.random.PRNGKey(0)
    k1, k2, k3, k4 = jax.random.split(key, 4)

    # Non-multiple-of-128 N to exercise the cdiv + padding path.
    N = 1000  # e.g. flattened b*na*h*w predictions

    # Boxes in xyxy with x2>=x1, y2>=y1.
    p_xy = jax.random.uniform(k1, (N, 2), jnp.float32, 0.0, 10.0)
    p_wh = jax.random.uniform(k2, (N, 2), jnp.float32, 0.5, 5.0)
    pbox = jnp.concatenate([p_xy, p_xy + p_wh], axis=-1)

    g_xy = jax.random.uniform(k3, (N, 2), jnp.float32, 0.0, 10.0)
    g_wh = jax.random.uniform(k4, (N, 2), jnp.float32, 0.5, 5.0)
    gbox = jnp.concatenate([g_xy, g_xy + g_wh], axis=-1)

    ioup = jax.random.normal(jax.random.PRNGKey(1), (N,), jnp.float32)

    out = iou_aware_loss(ioup, pbox, gbox)
    out = jax.block_until_ready(out)

    ref = _reference(ioup, pbox, gbox)
    assert out.shape == (N,)
    assert jnp.allclose(out, ref, atol=1e-5, rtol=1e-5)

    # Also check the planar (transpose-free) entry point.
    boxes8 = jnp.concatenate([pbox.T, gbox.T], axis=0)
    out2 = jax.block_until_ready(iou_aware_loss_planar(ioup, boxes8))
    assert jnp.allclose(out2, ref, atol=1e-5, rtol=1e-5)

    print("KERNEL_OK")
</pallas_src>

<mosaic_0001>
module attributes {stable_mosaic.version = 11 : i64} {
  func.func @_iou_aware_kernel(%arg0: i32, %arg1: memref<1x1024xf32, #tpu.memory_space<vmem>>, %arg2: memref<8x1024xf32, #tpu.memory_space<vmem>>, %arg3: memref<1x1024xf32, #tpu.memory_space<vmem>>) attributes {dimension_semantics = [#tpu.dimension_semantics<parallel>], iteration_bounds = array<i64: 1>, scalar_prefetch = 0 : i64, scratch_operands = 0 : i64, tpu.core_type = #tpu.core_type<tc>, window_params = [{transform_indices = @transform_0, window_bounds = array<i64: 1, 1024>}, {transform_indices = @transform_1, window_bounds = array<i64: 8, 1024>}, {transform_indices = @transform_2, window_bounds = array<i64: 1, 1024>}]} {
    %c0 = arith.constant 0 : index
    %c0_0 = arith.constant 0 : index
    %0 = vector.load %arg2[%c0, %c0_0] : memref<8x1024xf32, #tpu.memory_space<vmem>>, vector<8x1024xf32>
    %1 = vector.extract_strided_slice %0 {offsets = [0, 0], sizes = [1, 1024], strides = [1, 1]} : vector<8x1024xf32> to vector<1x1024xf32>
    %2 = vector.extract_strided_slice %0 {offsets = [1, 0], sizes = [1, 1024], strides = [1, 1]} : vector<8x1024xf32> to vector<1x1024xf32>
    %3 = vector.extract_strided_slice %0 {offsets = [2, 0], sizes = [1, 1024], strides = [1, 1]} : vector<8x1024xf32> to vector<1x1024xf32>
    %4 = vector.extract_strided_slice %0 {offsets = [3, 0], sizes = [1, 1024], strides = [1, 1]} : vector<8x1024xf32> to vector<1x1024xf32>
    %5 = vector.extract_strided_slice %0 {offsets = [4, 0], sizes = [1, 1024], strides = [1, 1]} : vector<8x1024xf32> to vector<1x1024xf32>
    %6 = vector.extract_strided_slice %0 {offsets = [5, 0], sizes = [1, 1024], strides = [1, 1]} : vector<8x1024xf32> to vector<1x1024xf32>
    %7 = vector.extract_strided_slice %0 {offsets = [6, 0], sizes = [1, 1024], strides = [1, 1]} : vector<8x1024xf32> to vector<1x1024xf32>
    %8 = vector.extract_strided_slice %0 {offsets = [7, 0], sizes = [1, 1024], strides = [1, 1]} : vector<8x1024xf32> to vector<1x1024xf32>
    %9 = arith.maximumf %1, %5 : vector<1x1024xf32>
    %10 = arith.maximumf %2, %6 : vector<1x1024xf32>
    %11 = arith.minimumf %3, %7 : vector<1x1024xf32>
    %12 = arith.minimumf %4, %8 : vector<1x1024xf32>
    %13 = arith.subf %11, %9 : vector<1x1024xf32>
    %cst = arith.constant 0.000000e+00 : f32
    %14 = vector.broadcast %cst : f32 to vector<1x1024xf32>
    %15 = arith.maximumf %13, %14 : vector<1x1024xf32>
    %16 = arith.subf %12, %10 : vector<1x1024xf32>
    %cst_1 = arith.constant 0.000000e+00 : f32
    %17 = vector.broadcast %cst_1 : f32 to vector<1x1024xf32>
    %18 = arith.maximumf %16, %17 : vector<1x1024xf32>
    %19 = arith.mulf %15, %18 : vector<1x1024xf32>
    %20 = arith.subf %3, %1 : vector<1x1024xf32>
    %cst_2 = arith.constant 0.000000e+00 : f32
    %21 = vector.broadcast %cst_2 : f32 to vector<1x1024xf32>
    %22 = arith.maximumf %20, %21 : vector<1x1024xf32>
    %23 = arith.subf %4, %2 : vector<1x1024xf32>
    %cst_3 = arith.constant 0.000000e+00 : f32
    %24 = vector.broadcast %cst_3 : f32 to vector<1x1024xf32>
    %25 = arith.maximumf %23, %24 : vector<1x1024xf32>
    %26 = arith.mulf %22, %25 : vector<1x1024xf32>
    %27 = arith.subf %7, %5 : vector<1x1024xf32>
    %cst_4 = arith.constant 0.000000e+00 : f32
    %28 = vector.broadcast %cst_4 : f32 to vector<1x1024xf32>
    %29 = arith.maximumf %27, %28 : vector<1x1024xf32>
    %30 = arith.subf %8, %6 : vector<1x1024xf32>
    %cst_5 = arith.constant 0.000000e+00 : f32
    %31 = vector.broadcast %cst_5 : f32 to vector<1x1024xf32>
    %32 = arith.maximumf %30, %31 : vector<1x1024xf32>
    %33 = arith.mulf %29, %32 : vector<1x1024xf32>
    %34 = arith.addf %26, %33 : vector<1x1024xf32>
    %35 = arith.subf %34, %19 : vector<1x1024xf32>
    %cst_6 = arith.constant 9.99999971E-10 : f32
    %36 = vector.broadcast %cst_6 : f32 to vector<1x1024xf32>
    %37 = arith.addf %35, %36 : vector<1x1024xf32>
    %38 = arith.divf %19, %37 : vector<1x1024xf32>
    %c0_7 = arith.constant 0 : index
    %c0_8 = arith.constant 0 : index
    %39 = vector.load %arg1[%c0_7, %c0_8] : memref<1x1024xf32, #tpu.memory_space<vmem>>, vector<1x1024xf32>
    %cst_9 = arith.constant 0.000000e+00 : f32
    %40 = vector.broadcast %cst_9 : f32 to vector<1x1024xf32>
    %41 = arith.maximumf %39, %40 : vector<1x1024xf32>
    %42 = arith.mulf %39, %38 : vector<1x1024xf32>
    %43 = arith.subf %41, %42 : vector<1x1024xf32>
    %44 = math.absf %39 : vector<1x1024xf32>
    %cst_10 = arith.constant 0.000000e+00 : f32
    %45 = vector.broadcast %cst_10 : f32 to vector<1x1024xf32>
    %46 = arith.subf %45, %44 : vector<1x1024xf32>
    %47 = math.exp %46 : vector<1x1024xf32>
    %48 = math.log1p %47 : vector<1x1024xf32>
    %49 = arith.addf %43, %48 : vector<1x1024xf32>
    %c0_11 = arith.constant 0 : index
    %c0_12 = arith.constant 0 : index
    %50 = vector.load %arg3[%c0_11, %c0_12] : memref<1x1024xf32, #tpu.memory_space<vmem>>, vector<1x1024xf32>
    tpu.vector_store %arg3[%c0_11, %c0_12], %49 {strides = array<i32>} : memref<1x1024xf32, #tpu.memory_space<vmem>>, vector<1x1024xf32>,
    return
  }
  func.func @transform_0(%arg0: i32) -> (i32, i32) {
    %c0_i32 = arith.constant 0 : i32
    %c0_i32_0 = arith.constant 0 : i32
    return %c0_i32, %arg0 : i32, i32
  }
  func.func @transform_1(%arg0: i32) -> (i32, i32) {
    %c0_i32 = arith.constant 0 : i32
    %c0_i32_0 = arith.constant 0 : i32
    return %c0_i32, %arg0 : i32, i32
  }
  func.func @transform_2(%arg0: i32) -> (i32, i32) {
    %c0_i32 = arith.constant 0 : i32
    %c0_i32_0 = arith.constant 0 : i32
    return %c0_i32, %arg0 : i32, i32
  }
}

</mosaic_0001>

<llo_original>
// kernel: tpu_custom_call.1
$region0: #{tpu_custom_call.1}
  #allocation0 [shape = 'u32[]', space=smem, size = 0x4, offset = 0x4, fixed_abs, tag = 'smem constant byte address 0x4 - core index']
  #allocation1 [shape = 'u32[72,128]{1,0:T(1,128)}', space=vmem, size = 0x9000, scoped, tag = 'internal scratch']
  %s0 = inlined_call_operand.hbm [shape: f32[1,1024], index: 0, kind: input, shape index: {}]
  %s1 = inlined_call_operand.hbm [shape: f32[8,1024], index: 1, kind: input, shape index: {}]
  %s2 = inlined_call_operand.hbm [shape: f32[1,1024], index: 2, kind: output, shape index: {}]
  %s3 = sld [smem:[#allocation0]]
  $region26: #{tpu_custom_call.1} parent=0
    _
  %s5 = ssub.s32 1, %s3
  %s6 = scalar_select 0, %s5, %s3
  $region1: #{tpu_custom_call.1} parent=0
    #allocation2 [shape = 'u8[4096]{0}', space=vmem, size = 0x1000, scoped, tag = 'input window, operand 0, single buffered']
    #allocation3 [shape = 's32[1]{0}', space=sflag, size = 0x4, scoped, tag = 'scoped memory for tpu_custom_call.1']
    #allocation4 [shape = 's32[1]{0}', space=sflag, size = 0x4, scoped, tag = 'scoped memory for tpu_custom_call.1']
    #allocation5 [shape = 'u8[32768]{0}', space=vmem, size = 0x8000, scoped, tag = 'input window, operand 1, single buffered']
    #allocation6 [shape = 's32[1]{0}', space=sflag, size = 0x4, scoped, tag = 'scoped memory for tpu_custom_call.1']
    #allocation7 [shape = 'u8[4096]{0}', space=vmem, size = 0x1000, scoped, tag = 'output window, operand 0, single buffered']
    %7 = vsyncpa [#allocation3], 0
    %8 = vsyncpa [#allocation6], 0
    %9 = vsyncpa [#allocation4], 0
    // Predicated region
    $region2: #{tpu_custom_call.1} parent=1 // pred_check
      _
    $region3: #{tpu_custom_call.1} parent=1 // pred_check_branch
      %11 = sbr.rel (0) target = $region5
    $region4: #{tpu_custom_call.1} parent=1 // pred_region
      %13 = vsyncadd [#allocation3], 0
      %s15 = sshll.u32 %s0, 4
      %s16 = int_to_ptr.hbm [resolvable:$true] %s15
      %s17 = sshll.u32 [#allocation2], 4
      %s18 = int_to_ptr.vmem [resolvable:$true] %s17
      %20 = dma.hbm_to_vmem [thread:$0]  %s16, 128, %s18, [#allocation3]
    $region5: #{tpu_custom_call.1} parent=1 // pred_fallthru
      _
    // Predicated region
    $region6: #{tpu_custom_call.1} parent=1 // pred_check
      _
    $region7: #{tpu_custom_call.1} parent=1 // pred_check_branch
      %22 = sbr.rel (0) target = $region9
    $region8: #{tpu_custom_call.1} parent=1 // pred_region
      %24 = vsyncadd [#allocation6], 0
      %s26 = sshll.u32 %s1, 4
      %s27 = int_to_ptr.hbm [resolvable:$true] %s26
      %s28 = sshll.u32 [#allocation5], 4
      %s29 = int_to_ptr.vmem [resolvable:$true] %s28
      %31 = dma.hbm_to_vmem [thread:$0]  %s27, 1024, %s29, [#allocation6]
    $region9: #{tpu_custom_call.1} parent=1 // pred_fallthru
      _
    // Predicated region
    $region10: #{tpu_custom_call.1} parent=1 // pred_check
      _
    $region11: #{tpu_custom_call.1} parent=1 // pred_check_branch
      %33 = sbr.rel (0) target = $region13
    $region12: #{tpu_custom_call.1} parent=1 // pred_region
      %35 = dma.done [#allocation3], 128
    $region13: #{tpu_custom_call.1} parent=1 // pred_fallthru
      _
    // Predicated region
    $region14: #{tpu_custom_call.1} parent=1 // pred_check
      _
    $region15: #{tpu_custom_call.1} parent=1 // pred_check_branch
      %37 = sbr.rel (0) target = $region17
    $region16: #{tpu_custom_call.1} parent=1 // pred_region
      %39 = dma.done [#allocation6], 1024
    $region17: #{tpu_custom_call.1} parent=1 // pred_fallthru
      _
    %v40 = vld [vmem:[#allocation5] sm:$0xff]
    %v41 = vld [vmem:[#allocation5 + $0x8] sm:$0xff]
    %v42 = vld [vmem:[#allocation5 + $0x10] sm:$0xff]
    %v43 = vld [vmem:[#allocation5 + $0x18] sm:$0xff]
    %v44 = vld [vmem:[#allocation5 + $0x20] sm:$0xff]
    %v45 = vld [vmem:[#allocation5 + $0x28] sm:$0xff]
    %v46 = vld [vmem:[#allocation5 + $0x30] sm:$0xff]
    %v47 = vld [vmem:[#allocation5 + $0x38] sm:$0xff]
    %v56 = vrot.slane %v40, 4
    %v57 = vrot.slane %v41, 4
    %v58 = vrot.slane %v42, 4
    %v59 = vrot.slane %v43, 4
    %v60 = vrot.slane %v44, 4
    %v61 = vrot.slane %v45, 4
    %v62 = vrot.slane %v46, 4
    %v63 = vrot.slane %v47, 4
    %v72 = vmax.f32 %v40, %v56
    %v73 = vmax.f32 %v41, %v57
    %v74 = vmax.f32 %v42, %v58
    %v75 = vmax.f32 %v43, %v59
    %v76 = vmax.f32 %v44, %v60
    %v77 = vmax.f32 %v45, %v61
    %v78 = vmax.f32 %v46, %v62
    %v79 = vmax.f32 %v47, %v63
    %v80 = vmin.f32 %v40, %v56
    %v81 = vmin.f32 %v41, %v57
    %v82 = vmin.f32 %v42, %v58
    %v83 = vmin.f32 %v43, %v59
    %v84 = vmin.f32 %v44, %v60
    %v85 = vmin.f32 %v45, %v61
    %v86 = vmin.f32 %v46, %v62
    %v87 = vmin.f32 %v47, %v63
    %v96 = vrot.slane %v72, 6
    %v97 = vrot.slane %v73, 6
    %v98 = vrot.slane %v74, 6
    %v99 = vrot.slane %v75, 6
    %v100 = vrot.slane %v76, 6
    %v101 = vrot.slane %v77, 6
    %v102 = vrot.slane %v78, 6
    %v103 = vrot.slane %v79, 6
    %v112 = vsub.f32 %v80, %v96
    %v113 = vsub.f32 %v81, %v97
    %v114 = vsub.f32 %v82, %v98
    %v115 = vsub.f32 %v83, %v99
    %v116 = vsub.f32 %v84, %v100
    %v117 = vsub.f32 %v85, %v101
    %v118 = vsub.f32 %v86, %v102
    %v119 = vsub.f32 %v87, %v103
    %v120 = vmax.f32 %v112, 0.0
    %v121 = vmax.f32 %v113, 0.0
    %v122 = vmax.f32 %v114, 0.0
    %v123 = vmax.f32 %v115, 0.0
    %v124 = vmax.f32 %v116, 0.0
    %v125 = vmax.f32 %v117, 0.0
    %v126 = vmax.f32 %v118, 0.0
    %v127 = vmax.f32 %v119, 0.0
    %v136 = vrot.slane %v120, 1
    %v137 = vrot.slane %v121, 1
    %v138 = vrot.slane %v122, 1
    %v139 = vrot.slane %v123, 1
    %v140 = vrot.slane %v124, 1
    %v141 = vrot.slane %v125, 1
    %v142 = vrot.slane %v126, 1
    %v143 = vrot.slane %v127, 1
    %v152 = vmul.f32 %v120, %v136
    %v153 = vmul.f32 %v121, %v137
    %v154 = vmul.f32 %v122, %v138
    %v155 = vmul.f32 %v123, %v139
    %v156 = vmul.f32 %v124, %v140
    %v157 = vmul.f32 %v125, %v141
    %v158 = vmul.f32 %v126, %v142
    %v159 = vmul.f32 %v127, %v143
    %v160 = vrot.slane %v40, 6
    %v161 = vrot.slane %v41, 6
    %v162 = vrot.slane %v42, 6
    %v163 = vrot.slane %v43, 6
    %v164 = vrot.slane %v44, 6
    %v165 = vrot.slane %v45, 6
    %v166 = vrot.slane %v46, 6
    %v167 = vrot.slane %v47, 6
    %v176 = vsub.f32 %v40, %v160
    %v177 = vsub.f32 %v41, %v161
    %v178 = vsub.f32 %v42, %v162
    %v179 = vsub.f32 %v43, %v163
    %v180 = vsub.f32 %v44, %v164
    %v181 = vsub.f32 %v45, %v165
    %v182 = vsub.f32 %v46, %v166
    %v183 = vsub.f32 %v47, %v167
    %v184 = vmax.f32 %v176, 0.0
    %v185 = vmax.f32 %v177, 0.0
    %v186 = vmax.f32 %v178, 0.0
    %v187 = vmax.f32 %v179, 0.0
    %v188 = vmax.f32 %v180, 0.0
    %v189 = vmax.f32 %v181, 0.0
    %v190 = vmax.f32 %v182, 0.0
    %v191 = vmax.f32 %v183, 0.0
    %v200 = vrot.slane %v184, 1
    %v201 = vrot.slane %v185, 1
    %v202 = vrot.slane %v186, 1
    %v203 = vrot.slane %v187, 1
    %v204 = vrot.slane %v188, 1
    %v205 = vrot.slane %v189, 1
    %v206 = vrot.slane %v190, 1
    %v207 = vrot.slane %v191, 1
    %v216 = vmul.f32 %v184, %v200
    %v217 = vmul.f32 %v185, %v201
    %v218 = vmul.f32 %v186, %v202
    %v219 = vmul.f32 %v187, %v203
    %v220 = vmul.f32 %v188, %v204
    %v221 = vmul.f32 %v189, %v205
    %v222 = vmul.f32 %v190, %v206
    %v223 = vmul.f32 %v191, %v207
    %v232 = vrot.slane %v216, 4
    %v233 = vrot.slane %v217, 4
    %v234 = vrot.slane %v218, 4
    %v235 = vrot.slane %v219, 4
    %v236 = vrot.slane %v220, 4
    %v237 = vrot.slane %v221, 4
    %v238 = vrot.slane %v222, 4
    %v239 = vrot.slane %v223, 4
    %v248 = vadd.f32 %v216, %v232
    %v249 = vadd.f32 %v217, %v233
    %v250 = vadd.f32 %v218, %v234
    %v251 = vadd.f32 %v219, %v235
    %v252 = vadd.f32 %v220, %v236
    %v253 = vadd.f32 %v221, %v237
    %v254 = vadd.f32 %v222, %v238
    %v255 = vadd.f32 %v223, %v239
    %v256 = vsub.f32 %v248, %v152
    %v257 = vsub.f32 %v249, %v153
    %v258 = vsub.f32 %v250, %v154
    %v259 = vsub.f32 %v251, %v155
    %v260 = vsub.f32 %v252, %v156
    %v261 = vsub.f32 %v253, %v157
    %v262 = vsub.f32 %v254, %v158
    %v263 = vsub.f32 %v255, %v159
    %v264 = vadd.f32 %v256, 1e-09
    %v265 = vadd.f32 %v257, 1e-09
    %v266 = vadd.f32 %v258, 1e-09
    %v267 = vadd.f32 %v259, 1e-09
    %v268 = vadd.f32 %v260, 1e-09
    %v269 = vadd.f32 %v261, 1e-09
    %v270 = vadd.f32 %v262, 1e-09
    %v271 = vadd.f32 %v263, 1e-09
    %v272 = vrcp.pop %v264
    %v273 = vmul.f32 %v264, %v272
    %v274 = vsub.f32 1.0, %v273
    %v275 = vmul.f32 %v272, %v274
    %v276 = vadd.f32 %v272, %v275
    %vm277 = vweird.f32 %v264
    %vm278 = vweird.f32 %v272
    %vm279 = vmor %vm277, %vm278
    %v280 = vsel %vm279, %v272, %v276
    %v281 = vand.u32 2147483647, %v264
    %vm282 = vcmp.eq.f32.partialorder %v281, 8.507059e+37
    %v283 = vand.u32 %v264, 2147483648
    %v284 = vor.u32 1.1754944e-38, %v283
    %v285 = vsel %vm282, %v284, %v280
    %v286 = vmul.f32 %v152, %v285
    %v287 = vrcp.pop %v265
    %v288 = vmul.f32 %v265, %v287
    %v289 = vsub.f32 1.0, %v288
    %v290 = vmul.f32 %v287, %v289
    %v291 = vadd.f32 %v287, %v290
    %vm292 = vweird.f32 %v265
    %vm293 = vweird.f32 %v287
    %vm294 = vmor %vm292, %vm293
    %v295 = vsel %vm294, %v287, %v291
    %v296 = vand.u32 2147483647, %v265
    %vm297 = vcmp.eq.f32.partialorder %v296, 8.507059e+37
    %v298 = vand.u32 %v265, 2147483648
    %v299 = vor.u32 1.1754944e-38, %v298
    %v300 = vsel %vm297, %v299, %v295
    %v301 = vmul.f32 %v153, %v300
    %v302 = vrcp.pop %v266
    %v303 = vmul.f32 %v266, %v302
    %v304 = vsub.f32 1.0, %v303
    %v305 = vmul.f32 %v302, %v304
    %v306 = vadd.f32 %v302, %v305
    %vm307 = vweird.f32 %v266
    %vm308 = vweird.f32 %v302
    %vm309 = vmor %vm307, %vm308
    %v310 = vsel %vm309, %v302, %v306
    %v311 = vand.u32 2147483647, %v266
    %vm312 = vcmp.eq.f32.partialorder %v311, 8.507059e+37
    %v313 = vand.u32 %v266, 2147483648
    %v314 = vor.u32 1.1754944e-38, %v313
    %v315 = vsel %vm312, %v314, %v310
    %v316 = vmul.f32 %v154, %v315
    %v317 = vrcp.pop %v267
    %v318 = vmul.f32 %v267, %v317
    %v319 = vsub.f32 1.0, %v318
    %v320 = vmul.f32 %v317, %v319
    %v321 = vadd.f32 %v317, %v320
    %vm322 = vweird.f32 %v267
    %vm323 = vweird.f32 %v317
    %vm324 = vmor %vm322, %vm323
    %v325 = vsel %vm324, %v317, %v321
    %v326 = vand.u32 2147483647, %v267
    %vm327 = vcmp.eq.f32.partialorder %v326, 8.507059e+37
    %v328 = vand.u32 %v267, 2147483648
    %v329 = vor.u32 1.1754944e-38, %v328
    %v330 = vsel %vm327, %v329, %v325
    %v331 = vmul.f32 %v155, %v330
    %v332 = vrcp.pop %v268
    %v333 = vmul.f32 %v268, %v332
    %v334 = vsub.f32 1.0, %v333
    %v335 = vmul.f32 %v332, %v334
    %v336 = vadd.f32 %v332, %v335
    %vm337 = vweird.f32 %v268
    %vm338 = vweird.f32 %v332
    %vm339 = vmor %vm337, %vm338
    %v340 = vsel %vm339, %v332, %v336
    %v341 = vand.u32 2147483647, %v268
    %vm342 = vcmp.eq.f32.partialorder %v341, 8.507059e+37
    %v343 = vand.u32 %v268, 2147483648
    %v344 = vor.u32 1.1754944e-38, %v343
    %v345 = vsel %vm342, %v344, %v340
    %v346 = vmul.f32 %v156, %v345
    %v347 = vrcp.pop %v269
    %v348 = vmul.f32 %v269, %v347
    %v349 = vsub.f32 1.0, %v348
    %v350 = vmul.f32 %v347, %v349
    %v351 = vadd.f32 %v347, %v350
    %vm352 = vweird.f32 %v269
    %vm353 = vweird.f32 %v347
    %vm354 = vmor %vm352, %vm353
    %v355 = vsel %vm354, %v347, %v351
    %v356 = vand.u32 2147483647, %v269
    %vm357 = vcmp.eq.f32.partialorder %v356, 8.507059e+37
    %v358 = vand.u32 %v269, 2147483648
    %v359 = vor.u32 1.1754944e-38, %v358
    %v360 = vsel %vm357, %v359, %v355
    %v361 = vmul.f32 %v157, %v360
    %v362 = vrcp.pop %v270
    %v363 = vmul.f32 %v270, %v362
    %v364 = vsub.f32 1.0, %v363
    %v365 = vmul.f32 %v362, %v364
    %v366 = vadd.f32 %v362, %v365
    %vm367 = vweird.f32 %v270
    %vm368 = vweird.f32 %v362
    %vm369 = vmor %vm367, %vm368
    %v370 = vsel %vm369, %v362, %v366
    %v371 = vand.u32 2147483647, %v270
    %vm372 = vcmp.eq.f32.partialorder %v371, 8.507059e+37
    %v373 = vand.u32 %v270, 2147483648
    %v374 = vor.u32 1.1754944e-38, %v373
    %v375 = vsel %vm372, %v374, %v370
    %v376 = vmul.f32 %v158, %v375
    %v377 = vrcp.pop %v271
    %v378 = vmul.f32 %v271, %v377
    %v379 = vsub.f32 1.0, %v378
    %v380 = vmul.f32 %v377, %v379
    %v381 = vadd.f32 %v377, %v380
    %vm382 = vweird.f32 %v271
    %vm383 = vweird.f32 %v377
    %vm384 = vmor %vm382, %vm383
    %v385 = vsel %vm384, %v377, %v381
    %v386 = vand.u32 2147483647, %v271
    %vm387 = vcmp.eq.f32.partialorder %v386, 8.507059e+37
    %v388 = vand.u32 %v271, 2147483648
    %v389 = vor.u32 1.1754944e-38, %v388
    %v390 = vsel %vm387, %v389, %v385
    %v391 = vmul.f32 %v159, %v390
    %v392 = vld [vmem:[#allocation2] sm:$0xff]
    %v393 = vmax.f32 %v392, 0.0
    %402 = vst [vmem:[#allocation1] sm:$0xff] %v286
    %403 = vst [vmem:[#allocation1 + $0x9] sm:$0xff] %v301
    %404 = vst [vmem:[#allocation1 + $0x12] sm:$0xff] %v316
    %405 = vst [vmem:[#allocation1 + $0x1b] sm:$0xff] %v331
    %406 = vst [vmem:[#allocation1 + $0x24] sm:$0xff] %v346
    %407 = vst [vmem:[#allocation1 + $0x2d] sm:$0xff] %v361
    %408 = vst [vmem:[#allocation1 + $0x36] sm:$0xff] %v376
    %409 = vst [vmem:[#allocation1 + $0x3f] sm:$0xff] %v391
    %s410 = scalar_lea.vmem [#allocation1], 2
    %v411 = vld [vmem:[%s410] ss:$9 sm:$0xff]
    %v413 = vmul.f32 %v392, %v411
    %v414 = vsub.f32 %v393, %v413
    %v415 = vand.u32 2147483647, %v392
    %v416 = vsub.f32 0.0, %v415
    %v417 = vmul.f32 %v416, 1.442695
    %v418 = vpow.pop %v417
    %v419 = vadd.f32 %v418, 1.0
    %v420 = vlog2.pop %v419
    %v421 = vmul.f32 %v420, 0.6931472
    %v422 = vmul.f32 -0.5, %v418
    %v423 = vadd.f32 %v422, 1.0
    %v424 = vmul.f32 %v423, %v418
    %v425 = vand.u32 2147483647, %v418
    %vm426 = vcmp.lt.f32.partialorder %v425, 0.0004427343
    %v427 = vsel %vm426, %v424, %v421
    %v428 = vadd.f32 %v414, %v427
    %429 = vst [vmem:[#allocation7] sm:$0xff] %v428
    // Predicated region
    $region18: #{tpu_custom_call.1} parent=1 // pred_check
      _
    $region19: #{tpu_custom_call.1} parent=1 // pred_check_branch
      %431 = sbr.rel (0) target = $region21
    $region20: #{tpu_custom_call.1} parent=1 // pred_region
      %433 = vsyncadd [#allocation4], 0
      %s435 = sshll.u32 [#allocation7], 4
      %s436 = int_to_ptr.vmem [resolvable:$true] %s435
      %s437 = sshll.u32 %s2, 4
      %s438 = int_to_ptr.hbm [resolvable:$true] %s437
      %440 = dma.vmem_to_hbm [thread:$0]  %s436, 128, %s438, [#allocation4]
    $region21: #{tpu_custom_call.1} parent=1 // pred_fallthru
      _
    // Predicated region
    $region22: #{tpu_custom_call.1} parent=1 // pred_check
      _
    $region23: #{tpu_custom_call.1} parent=1 // pred_check_branch
      %442 = sbr.rel (0) target = $region25
    $region24: #{tpu_custom_call.1} parent=1 // pred_region
      %444 = dma.done [#allocation4], 128
    $region25: #{tpu_custom_call.1} parent=1 // pred_fallthru
      _
    %445 = vsyncpa [#allocation3], 1
    %446 = vsyncpa [#allocation6], 1
    %447 = vsyncpa [#allocation4], 1

</llo_original>
